<compile_context>
chip_gen: v6e
topology: v6e:2x2x1
jax: 0.10.0
libtpu: 0.0.40
codegen_flags: <defaults>
</compile_context>

<pallas_src>
import functools

import jax
import jax.numpy as jnp
from jax.experimental import pallas as pl
from jax.experimental.pallas import tpu as pltpu


def _ce_sum_kernel(logits_ref, target_ref, out_ref, acc_ref, *,
                   hw, tile_n, n_inner, needs_mask):
    """One grid step: cross-entropy over a (C, TN) logits tile of one batch item.

    grid = (B, n_outer, n_inner); the inner pixel-tile axis (axis 2) is the
    reduction axis, batch and outer pixel-chunk axes are parallel.

    logits_ref : (C, TN) logits for TN pixels (f32 or bf16)
    target_ref : (1, TN) integer class indices
    out_ref    : (1, 1)  f32 per-(batch, outer-chunk) CE partial sum
    acc_ref    : (1, TN) f32 lane-resident partial-sum accumulator (VMEM scratch)
    """
    i = pl.program_id(2)

    @pl.when(i == 0)
    def _():
        acc_ref[...] = jnp.zeros_like(acc_ref)

    x = logits_ref[...]                                      # (C, TN)
    if x.dtype != jnp.float32:
        x = x.astype(jnp.float32)
    t = target_ref[...]                                      # (1, TN)
    if t.dtype != jnp.int32:
        t = t.astype(jnp.int32)
    c, tn = x.shape

    # true-class logit via iota compare (no one-hot materialized in HBM)
    cls = jax.lax.broadcasted_iota(jnp.int32, (c, tn), 0)
    true_logit = jnp.sum(jnp.where(cls == t, x, 0.0), axis=0, keepdims=True)  # (1,TN)

    # numerically stable log-sum-exp along the class (sublane) axis
    m = jnp.max(x, axis=0, keepdims=True)                                     # (1,TN)
    lse = m + jnp.log(jnp.sum(jnp.exp(x - m), axis=0, keepdims=True))         # (1,TN)
    ce = lse - true_logit                                                     # (1,TN)

    if needs_mask:
        # Only the globally-last pixel tile can be partial; gate the mask so
        # full tiles pay nothing.
        is_last = jnp.logical_and(pl.program_id(1) == pl.num_programs(1) - 1,
                                  i == pl.num_programs(2) - 1)

        @pl.when(jnp.logical_not(is_last))
        def _():
            acc_ref[...] += ce

        @pl.when(is_last)
        def _():
            base = (pl.program_id(1) * n_inner + i) * tile_n
            col = base + jax.lax.broadcasted_iota(jnp.int32, (1, tn), 1)
            # NOTE: keep this a select -- OOB columns can hold Inf/NaN garbage
            # from reads past the array end; 0 * Inf would be NaN.
            acc_ref[...] += jnp.where(col < hw, ce, 0.0)
    else:
        acc_ref[...] += ce

    @pl.when(i == pl.num_programs(2) - 1)
    def _():
        out_ref[...] = jnp.sum(acc_ref[...], axis=1, keepdims=True)


def ssn_network_mean_loss(result_dict, target, *,
                          target_block_bytes=2 * 1024 * 1024):
    """JAX/Pallas equivalent of SsnNetworkMeanLossWrapper with
    loss_func = CrossEntropyLoss(reduction='mean').

    result_dict['logit_mean'] : [B, C, H, W] logits (f32 or bf16, NCHW as in PyTorch)
    target                    : [B, H, W] integer class indices in [0, C)
    returns                   : f32 scalar
    """
    mean = result_dict['logit_mean']
    b, c, h, w = mean.shape
    hw = h * w
    n = b * hw

    # natural-layout views only: free reshapes, no transpose / pad / one-hot
    logits = mean.reshape(b, c, hw)
    tgt = target.reshape(b, 1, hw)
    if not jnp.issubdtype(tgt.dtype, jnp.integer):
        tgt = tgt.astype(jnp.int32)

    # Pixel-tile width: size one logits block to ~target_block_bytes
    # (accounting for sublane padding of C up to a multiple of 8), lane
    # aligned, capped at hw.  With ~2 MiB logits blocks, total pipelined VMEM
    # (2x logits + 2x target + acc) stays ~<= 12 MiB -- fine on v7x's 64 MiB
    # and ~85%+ of HBM roofline everywhere.
    itemsize = jnp.dtype(logits.dtype).itemsize
    c_pad = ((c + 7) // 8) * 8
    tile_n = target_block_bytes // (c_pad * itemsize)
    if tile_n >= hw:
        tile_n = hw                                   # full-extent block (always legal)
    else:
        tile_n = max(128, (tile_n // 128) * 128)      # lane-aligned tile

    n_tiles = pl.cdiv(hw, tile_n)
    needs_mask = (hw % tile_n) != 0

    # Outer parallel pixel-chunk axis: lets v7x's two TensorCores share the
    # work when the batch axis alone can't (B == 1).  No effect on v5e/v6e.
    if b >= 2 or n_tiles < 2 or (n_tiles % 2) != 0:
        n_outer = 1
    else:
        n_outer = 2
    n_inner = n_tiles // n_outer

    kernel = functools.partial(_ce_sum_kernel, hw=hw, tile_n=tile_n,
                               n_inner=n_inner, needs_mask=needs_mask)

    cost = pl.CostEstimate(
        flops=6 * b * c * hw,
        transcendentals=b * c * hw + b * hw,
        bytes_accessed=(b * c * hw * itemsize
                        + b * hw * jnp.dtype(tgt.dtype).itemsize
                        + b * n_outer * 4),
    )

    partial_sums = pl.pallas_call(
        kernel,
        out_shape=jax.ShapeDtypeStruct((b, n_outer, 1, 1), jnp.float32),
        grid_spec=pltpu.PrefetchScalarGridSpec(
            num_scalar_prefetch=0,
            grid=(b, n_outer, n_inner),
            in_specs=[
                pl.BlockSpec((None, c, tile_n),
                             lambda bb, o, i: (bb, 0, o * n_inner + i)),
                pl.BlockSpec((None, 1, tile_n),
                             lambda bb, o, i: (bb, 0, o * n_inner + i)),
            ],
            out_specs=pl.BlockSpec((None, None, 1, 1),
                                   lambda bb, o, i: (bb, o, 0, 0)),
            scratch_shapes=[pltpu.VMEM((1, tile_n), jnp.float32)],
        ),
        compiler_params=pltpu.CompilerParams(
            dimension_semantics=("parallel", "parallel", "arbitrary"),
            vmem_limit_bytes=48 * 1024 * 1024),
        cost_estimate=cost,
    )(logits, tgt)

    return jnp.sum(partial_sums) / float(n)


if __name__ == "__main__":
    key = jax.random.PRNGKey(0)
    k1, k2 = jax.random.split(key)

    B, C, H, W = 2, 4, 16, 16
    logit_mean = jax.random.normal(k1, (B, C, H, W), dtype=jnp.float32)
    target = jax.random.randint(k2, (B, H, W), 0, C, dtype=jnp.int32)

    result_dict = {'logit_mean': logit_mean,
                   'logit_cov':  jnp.zeros((B, C, H, W), jnp.float32)}  # unused by wrapper

    loss = jax.block_until_ready(ssn_network_mean_loss(result_dict, target))

    # pure-JAX reference (== torch.nn.CrossEntropyLoss(reduction='mean'))
    logp = jax.nn.log_softmax(logit_mean, axis=1)
    ref = -jnp.mean(jnp.take_along_axis(logp, target[:, None], axis=1))
    assert jnp.allclose(loss, ref, rtol=1e-5, atol=1e-5), (loss, ref)

    print("KERNEL_OK")
</pallas_src>

<mosaic_0001>
module attributes {stable_mosaic.version = 11 : i64} {
  func.func @_ce_sum_kernel(%arg0: i32, %arg1: i32, %arg2: i32, %arg3: memref<1x4x256xf32, #tpu.memory_space<vmem>>, %arg4: memref<1x1x256xi32, #tpu.memory_space<vmem>>, %arg5: memref<1x1x1x1xf32, #tpu.memory_space<vmem>>, %arg6: memref<1x256xf32, #tpu.memory_space<vmem>>) attributes {dimension_semantics = [#tpu.dimension_semantics<parallel>, #tpu.dimension_semantics<parallel>, #tpu.dimension_semantics<arbitrary>], iteration_bounds = array<i64: 2, 1, 1>, scalar_prefetch = 0 : i64, scratch_operands = 1 : i64, tpu.core_type = #tpu.core_type<tc>, window_params = [{transform_indices = @transform_0, window_bounds = array<i64: 1, 4, 256>}, {transform_indices = @transform_1, window_bounds = array<i64: 1, 1, 256>}, {transform_indices = @transform_2, window_bounds = array<i64: 1, 1, 1, 1>}]} {
    %c0_i32 = arith.constant 0 : i32
    %0 = arith.cmpi eq, %arg2, %c0_i32 : i32
    %1 = arith.extui %0 : i1 to i32
    %c0_i32_0 = arith.constant 0 : i32
    %2 = arith.cmpi ne, %1, %c0_i32_0 : i32
    scf.if %2 {
      %cst_15 = arith.constant 0.000000e+00 : f32
      %30 = vector.broadcast %cst_15 : f32 to vector<1x256xf32>
      %c0_16 = arith.constant 0 : index
      %c0_17 = arith.constant 0 : index
      %31 = vector.load %arg6[%c0_16, %c0_17] : memref<1x256xf32, #tpu.memory_space<vmem>>, vector<1x256xf32>
      tpu.vector_store %arg6[%c0_16, %c0_17], %30 {strides = array<i32>} : memref<1x256xf32, #tpu.memory_space<vmem>>, vector<1x256xf32>,
    } else {
    }
    %c0 = arith.constant 0 : index
    %c0_1 = arith.constant 0 : index
    %c0_2 = arith.constant 0 : index
    %3 = vector.load %arg3[%c0, %c0_1, %c0_2] : memref<1x4x256xf32, #tpu.memory_space<vmem>>, vector<1x4x256xf32>
    %4 = vector.shape_cast %3 : vector<1x4x256xf32> to vector<4x256xf32>
    %c0_3 = arith.constant 0 : index
    %c0_4 = arith.constant 0 : index
    %c0_5 = arith.constant 0 : index
    %5 = vector.load %arg4[%c0_3, %c0_4, %c0_5] : memref<1x1x256xi32, #tpu.memory_space<vmem>>, vector<1x1x256xi32>
    %6 = vector.shape_cast %5 : vector<1x1x256xi32> to vector<1x256xi32>
    %7 = tpu.iota {dimensions = array<i32: 0>} : vector<4x256xi32>
    %8 = vector.broadcast %6 : vector<1x256xi32> to vector<4x256xi32>
    %9 = arith.cmpi eq, %7, %8 : vector<4x256xi32>
    %cst = arith.constant 0.000000e+00 : f32
    %10 = vector.broadcast %cst : f32 to vector<4x256xf32>
    %11 = arith.select %9, %4, %10 : vector<4x256xi1>, vector<4x256xf32>
    %cst_6 = arith.constant dense<0.000000e+00> : vector<256xf32>
    %12 = vector.multi_reduction <add>, %11, %cst_6 [0] : vector<4x256xf32> to vector<256xf32>
    %13 = vector.shape_cast %12 : vector<256xf32> to vector<1x256xf32>
    %cst_7 = arith.constant dense<0xFF800000> : vector<256xf32>
    %14 = vector.multi_reduction <maximumf>, %4, %cst_7 [0] : vector<4x256xf32> to vector<256xf32>
    %15 = vector.shape_cast %14 : vector<256xf32> to vector<1x256xf32>
    %16 = vector.broadcast %15 : vector<1x256xf32> to vector<4x256xf32>
    %17 = arith.subf %4, %16 : vector<4x256xf32>
    %18 = math.exp %17 : vector<4x256xf32>
    %cst_8 = arith.constant dense<0.000000e+00> : vector<256xf32>
    %19 = vector.multi_reduction <add>, %18, %cst_8 [0] : vector<4x256xf32> to vector<256xf32>
    %20 = vector.shape_cast %19 : vector<256xf32> to vector<1x256xf32>
    %21 = math.log %20 : vector<1x256xf32>
    %22 = arith.addf %15, %21 : vector<1x256xf32>
    %23 = arith.subf %22, %13 : vector<1x256xf32>
    %c0_9 = arith.constant 0 : index
    %c0_10 = arith.constant 0 : index
    %24 = vector.load %arg6[%c0_9, %c0_10] : memref<1x256xf32, #tpu.memory_space<vmem>>, vector<1x256xf32>
    %25 = arith.addf %24, %23 : vector<1x256xf32>
    %c0_11 = arith.constant 0 : index
    %c0_12 = arith.constant 0 : index
    %26 = vector.load %arg6[%c0_11, %c0_12] : memref<1x256xf32, #tpu.memory_space<vmem>>, vector<1x256xf32>
    tpu.vector_store %arg6[%c0_11, %c0_12], %25 {strides = array<i32>} : memref<1x256xf32, #tpu.memory_space<vmem>>, vector<1x256xf32>,
    %c0_i32_13 = arith.constant 0 : i32
    %27 = arith.cmpi eq, %arg2, %c0_i32_13 : i32
    %28 = arith.extui %27 : i1 to i32
    %c0_i32_14 = arith.constant 0 : i32
    %29 = arith.cmpi ne, %28, %c0_i32_14 : i32
    scf.if %29 {
      %c0_15 = arith.constant 0 : index
      %c0_16 = arith.constant 0 : index
      %30 = vector.load %arg6[%c0_15, %c0_16] : memref<1x256xf32, #tpu.memory_space<vmem>>, vector<1x256xf32>
      %cst_17 = arith.constant dense<0.000000e+00> : vector<1xf32>
      %31 = vector.multi_reduction <add>, %30, %cst_17 [1] : vector<1x256xf32> to vector<1xf32>
      %32 = vector.shape_cast %31 : vector<1xf32> to vector<1x1xf32>
      %c0_18 = arith.constant 0 : index
      %c0_19 = arith.constant 0 : index
      %c0_20 = arith.constant 0 : index
      %c0_21 = arith.constant 0 : index
      %33 = vector.load %arg5[%c0_18, %c0_19, %c0_20, %c0_21] : memref<1x1x1x1xf32, #tpu.memory_space<vmem>>, vector<1x1x1x1xf32>
      %34 = vector.shape_cast %33 : vector<1x1x1x1xf32> to vector<1x1xf32>
      %35 = vector.shape_cast %32 : vector<1x1xf32> to vector<1x1x1x1xf32>
      tpu.vector_store %arg5[%c0_18, %c0_19, %c0_20, %c0_21], %35 {strides = array<i32>} : memref<1x1x1x1xf32, #tpu.memory_space<vmem>>, vector<1x1x1x1xf32>,
    } else {
    }
    return
  }
  func.func @transform_0(%arg0: i32, %arg1: i32, %arg2: i32) -> (i32, i32, i32) {
    %c1_i32 = arith.constant 1 : i32
    %0 = arith.muli %arg1, %c1_i32 : i32
    %1 = arith.addi %0, %arg2 : i32
    %c0_i32 = arith.constant 0 : i32
    %c0_i32_0 = arith.constant 0 : i32
    return %arg0, %c0_i32, %1 : i32, i32, i32
  }
  func.func @transform_1(%arg0: i32, %arg1: i32, %arg2: i32) -> (i32, i32, i32) {
    %c1_i32 = arith.constant 1 : i32
    %0 = arith.muli %arg1, %c1_i32 : i32
    %1 = arith.addi %0, %arg2 : i32
    %c0_i32 = arith.constant 0 : i32
    %c0_i32_0 = arith.constant 0 : i32
    return %arg0, %c0_i32, %1 : i32, i32, i32
  }
  func.func @transform_2(%arg0: i32, %arg1: i32, %arg2: i32) -> (i32, i32, i32, i32) {
    %c0_i32 = arith.constant 0 : i32
    %c0_i32_0 = arith.constant 0 : i32
    %c0_i32_1 = arith.constant 0 : i32
    return %arg0, %arg1, %c0_i32, %c0_i32_0 : i32, i32, i32, i32
  }
}

</mosaic_0001>

<llo_original>
// kernel: tpu_custom_call.1
$region0: #{tpu_custom_call.1}
  #allocation0 [shape = 'u32[]', space=smem, size = 0x4, offset = 0x4, fixed_abs, tag = 'smem constant byte address 0x4 - core index']
  #allocation1 [shape = 'u32[144,128]{1,0:T(1,128)}', space=vmem, size = 0x12000, scoped, tag = 'internal scratch']
  #allocation2 [shape = 'f32[1,256]{1,0:T(1,128)}', space=vmem, size = 0x400, scoped, tag = 'scratch operand']
  %s0 = inlined_call_operand.hbm [shape: f32[2,4,256], index: 0, kind: input, shape index: {}]
  %s1 = inlined_call_operand.hbm [shape: s32[2,1,256], index: 1, kind: input, shape index: {}]
  %s2 = inlined_call_operand.vmem [shape: f32[2,1,1,1], index: 2, kind: output, shape index: {}]
  %s3 = sld [smem:[#allocation0]]
  $region57: #{tpu_custom_call.1} parent=0
    _
  %s5 = ssub.s32 1, %s3
  %s6 = scalar_select 0, %s5, %s3
  $region1: #{tpu_custom_call.1} parent=0
    #allocation3 [shape = 'u8[8192]{0}', space=vmem, size = 0x2000, scoped, tag = 'input window, operand 0']
    #allocation4 [shape = 's32[2]{0}', space=sflag, size = 0x8, scoped, tag = 'scoped memory for tpu_custom_call.1']
    #allocation5 [shape = 'u8[2048]{0}', space=vmem, size = 0x800, scoped, tag = 'input window, operand 1']
    #allocation6 [shape = 's32[2]{0}', space=sflag, size = 0x8, scoped, tag = 'scoped memory for tpu_custom_call.1']
    %7 = vsyncpa [#allocation4], 0
    %s8 = scalar_lea.sflag [#allocation4], 1
    %9 = vsyncpa %s8, 0
    %10 = vsyncpa [#allocation6], 0
    %s11 = scalar_lea.sflag [#allocation6], 1
    %12 = vsyncpa %s11, 0
    loop: start=0, step=1, limit=4
    $region2: #{tpu_custom_call.1} parent=1 // loop_pre_header
      _
    $region3: #{tpu_custom_call.1} parent=1 // loop_header
      %s14 = sphi 0, %s18
      %p15 = scmp.ge.s32.totalorder %s14, 4
      %s21 = sphi 0, %s40
      %s22 = sphi 0, %s36
      %s23 = sphi 0, %s32
      %s24 = sphi 0, %s21
      %s25 = sphi 0, %s22
      %s26 = sphi 0, %s23
      %s27 = sphi 0, %s24
      %s28 = sphi 0, %s25
      %s29 = sphi 0, %s26
      %s47 = sphi 0, %s49
      %s50 = sphi 0, %s47
      %s51 = sphi 0, %s50
      %s67 = sphi 0, %s51
      %s77 = sphi 0, %s79
      %s80 = sphi 0, %s77
      %s81 = sphi 0, %s80
      %s97 = sphi 0, %s81
      %s105 = sphi 0, %s107
      %s108 = sphi 0, %s105
      %s109 = sphi 0, %s108
      %s125 = sphi 0, %s109
    $region4: #{tpu_custom_call.1} parent=1 // loop_header_branch
      %17 = sbr.rel (%p15) target = $region8
    $region5: #{tpu_custom_call.1} parent=1 // loop_body
      %s19 = ssub.s32 %s14, 1
      %s20 = ssub.s32 %s14, 2
      %s30 = sadd.s32 1, %s23
      %p31 = scmp.ge.s32.totalorder %s30, 1
      %s32 = scalar_select %p31, 0, %s30
      %s33 = sadd.s32 1, %s22
      %s34 = scalar_select %p31, %s33, %s22
      %p35 = scmp.ge.s32.totalorder %s34, 1
      %s36 = scalar_select %p35, 0, %s34
      %s37 = sadd.s32 1, %s21
      %s38 = scalar_select %p35, %s37, %s21
      %p39 = scmp.ge.s32.totalorder %s38, 2
      %s40 = scalar_select %p39, 0, %s38
      %s41 = sadd.s32 %s22, %s23
      %s42 = sadd.s32 %s36, %s32
      %s43 = ssub.s32 %s21, %s40
      %s44 = ssub.s32 %s41, %s42
      %s45 = sor.u32 %s43, %s44
      %p46 = scmp.eq.s32.totalorder %s45, 0
      %s48 = sadd.s32 %s47, 1
      %s49 = scalar_select %p46, %s47, %s48
      %p52 = pneg %p46
      %p53 = scmp.eq.s32.totalorder %s14, 1
      %p54 = por %p52, %p53
      %p55 = scmp.ne.s32.totalorder %s47, %s50
      %p56 = scmp.eq.s32.totalorder %s14, 0
      %p57 = por %p55, %p56
      %p58 = scmp.ne.s32.totalorder %s47, %s50
      %p59 = scmp.eq.s32.totalorder %s19, 1
      %p60 = por %p58, %p59
      %p61 = scmp.ne.s32.totalorder %s50, %s51
      %p62 = scmp.eq.s32.totalorder %s19, 0
      %p63 = por %p61, %p62
      %p64 = scmp.ne.s32.totalorder %s50, %s51
      %p65 = scmp.eq.s32.totalorder %s20, 1
      %p66 = por %p64, %p65
      %p68 = scmp.ne.s32.totalorder %s51, %s67
      %p69 = scmp.eq.s32.totalorder %s20, 0
      %p70 = por %p68, %p69
      %s71 = sadd.s32 %s22, %s23
      %s72 = sadd.s32 %s36, %s32
      %s73 = ssub.s32 %s21, %s40
      %s74 = ssub.s32 %s71, %s72
      %s75 = sor.u32 %s73, %s74
      %p76 = scmp.eq.s32.totalorder %s75, 0
      %s78 = sadd.s32 %s77, 1
      %s79 = scalar_select %p76, %s77, %s78
      %p82 = pneg %p76
      %p83 = scmp.eq.s32.totalorder %s14, 1
      %p84 = por %p82, %p83
      %p85 = scmp.ne.s32.totalorder %s77, %s80
      %p86 = scmp.eq.s32.totalorder %s14, 0
      %p87 = por %p85, %p86
      %p88 = scmp.ne.s32.totalorder %s77, %s80
      %p89 = scmp.eq.s32.totalorder %s19, 1
      %p90 = por %p88, %p89
      %p91 = scmp.ne.s32.totalorder %s80, %s81
      %p92 = scmp.eq.s32.totalorder %s19, 0
      %p93 = por %p91, %p92
      %p94 = scmp.ne.s32.totalorder %s80, %s81
      %p95 = scmp.eq.s32.totalorder %s20, 1
      %p96 = por %p94, %p95
      %p98 = scmp.ne.s32.totalorder %s81, %s97
      %p99 = scmp.eq.s32.totalorder %s20, 0
      %p100 = por %p98, %p99
      %s101 = ssub.s32 %s21, %s40
      %s102 = ssub.s32 %s22, %s36
      %s103 = sor.u32 %s101, %s102
      %p104 = scmp.eq.s32.totalorder %s103, 0
      %s106 = sadd.s32 %s105, 1
      %s107 = scalar_select %p104, %s105, %s106
      %p110 = pneg %p104
      %p111 = scmp.eq.s32.totalorder %s14, 1
      %p112 = por %p110, %p111
      %p113 = scmp.ne.s32.totalorder %s105, %s108
      %p114 = scmp.eq.s32.totalorder %s14, 0
      %p115 = por %p113, %p114
      %p116 = scmp.ne.s32.totalorder %s105, %s108
      %p117 = scmp.eq.s32.totalorder %s19, 1
      %p118 = por %p116, %p117
      %p119 = scmp.ne.s32.totalorder %s108, %s109
      %p120 = scmp.eq.s32.totalorder %s19, 0
      %p121 = por %p119, %p120
      %p122 = scmp.ne.s32.totalorder %s108, %s109
      %p123 = scmp.eq.s32.totalorder %s20, 1
      %p124 = por %p122, %p123
      %p126 = scmp.ne.s32.totalorder %s109, %s125
      %p127 = scmp.eq.s32.totalorder %s20, 0
      %p128 = por %p126, %p127
      %p129 = scmp.le.s32.totalorder 1, %s14
      %p130 = scmp.lt.s32.totalorder %s14, 3
      %p131 = pnand %p129, %p130
      %p132 = pneg %p131
      // Predicated region
      $region9: #{tpu_custom_call.1} parent=5 // pred_check
        _
      $region10: #{tpu_custom_call.1} parent=5 // pred_check_branch
        %134 = sbr.rel (%p131) target = $region12
      $region11: #{tpu_custom_call.1} parent=5 // pred_region
        %s135 = ssub.s32 %s14, 1
      $region12: #{tpu_custom_call.1} parent=5 // pred_fallthru
        _
      %p136 = scmp.lt.s32.totalorder %s14, 2
      // Predicated region
      $region13: #{tpu_custom_call.1} parent=5 // pred_check
        %p137 = pneg %p136
      $region14: #{tpu_custom_call.1} parent=5 // pred_check_branch
        %139 = sbr.rel (%p137) target = $region16
      $region15: #{tpu_custom_call.1} parent=5 // pred_region
        // Predicated region
        $region17: #{tpu_custom_call.1} parent=15 // pred_check
          %p140 = pneg %p57
        $region18: #{tpu_custom_call.1} parent=15 // pred_check_branch
          %142 = sbr.rel (%p140) target = $region20
        $region19: #{tpu_custom_call.1} parent=15 // pred_region
          %s143 = sand.u32 %s47, 1
          %s144 = scalar_lea.sflag [#allocation4], %s143
          %s145 = sand.u32 %s47, 1
          %s146 = smul.addr %s145, 8
          %s147 = scalar_lea.vmem [#allocation3], %s146
          %s148 = sadd.s32 %s22, %s23
          %s149 = smul.u32 2, %s148
          %s151 = ssub.s32 128, 128
          %152 = vsyncadd %s144, %s151
          %s153 = smul.addr %s21, 2
          %s154 = sadd.s32 %s149, %s153
          %s155 = smul.addr %s154, 64
          %s156 = scalar_lea.hbm %s0, %s155
          %s158 = sshll.u32 %s147, 4
          %s159 = int_to_ptr.vmem [resolvable:$true] %s158
          %161 = dma.hbm_to_vmem [thread:$0]  %s156, 128, %s159, %s144
        $region20: #{tpu_custom_call.1} parent=15 // pred_fallthru
          _
        // Predicated region
        $region21: #{tpu_custom_call.1} parent=15 // pred_check
          %p162 = pneg %p87
        $region22: #{tpu_custom_call.1} parent=15 // pred_check_branch
          %164 = sbr.rel (%p162) target = $region24
        $region23: #{tpu_custom_call.1} parent=15 // pred_region
          %s165 = sand.u32 %s77, 1
          %s166 = scalar_lea.sflag [#allocation6], %s165
          %s167 = sand.u32 %s77, 1
          %s168 = smul.addr %s167, 2
          %s169 = scalar_lea.vmem [#allocation5], %s168
          %s170 = sadd.s32 %s22, %s23
          %s171 = smul.u32 2, %s170
          %s173 = ssub.s32 32, 32
          %174 = vsyncadd %s166, %s173
          %s175 = smul.addr %s21, 2
          %s176 = sadd.s32 %s171, %s175
          %s177 = smul.addr %s176, 16
          %s178 = scalar_lea.hbm %s1, %s177
          %s180 = sshll.u32 %s169, 4
          %s181 = int_to_ptr.vmem [resolvable:$true] %s180
          %183 = dma.hbm_to_vmem [thread:$0]  %s178, 32, %s181, %s166
        $region24: #{tpu_custom_call.1} parent=15 // pred_fallthru
          _
      $region16: #{tpu_custom_call.1} parent=5 // pred_fallthru
        _
      %p184 = scmp.le.s32.totalorder 1, %s14
      %p185 = scmp.lt.s32.totalorder %s14, 3
      %p186 = pnand %p184, %p185
      %p187 = pneg %p186
      // Predicated region
      $region25: #{tpu_custom_call.1} parent=5 // pred_check
        _
      $region26: #{tpu_custom_call.1} parent=5 // pred_check_branch
        %189 = sbr.rel (%p186) target = $region28
      $region27: #{tpu_custom_call.1} parent=5 // pred_region
        %s190 = ssub.s32 %s14, 1
        %s191 = sand.u32 %s50, 1
        %s192 = scalar_lea.sflag [#allocation4], %s191
        %s193 = sand.u32 %s50, 1
        %s194 = smul.addr %s193, 8
        %s195 = scalar_lea.vmem [#allocation3], %s194
        // Predicated region
        $region29: #{tpu_custom_call.1} parent=27 // pred_check
          %p196 = pneg %p63
        $region30: #{tpu_custom_call.1} parent=27 // pred_check_branch
          %198 = sbr.rel (%p196) target = $region32
        $region31: #{tpu_custom_call.1} parent=27 // pred_region
          %199 = dma.done %s192, 128
        $region32: #{tpu_custom_call.1} parent=27 // pred_fallthru
          _
        %s200 = sand.u32 %s80, 1
        %s201 = scalar_lea.sflag [#allocation6], %s200
        %s202 = sand.u32 %s80, 1
        %s203 = smul.addr %s202, 2
        %s204 = scalar_lea.vmem [#allocation5], %s203
        // Predicated region
        $region33: #{tpu_custom_call.1} parent=27 // pred_check
          %p205 = pneg %p93
        $region34: #{tpu_custom_call.1} parent=27 // pred_check_branch
          %207 = sbr.rel (%p205) target = $region36
        $region35: #{tpu_custom_call.1} parent=27 // pred_region
          %208 = dma.done %s201, 32
        $region36: #{tpu_custom_call.1} parent=27 // pred_fallthru
          _
        %s209 = sand.u32 %s50, 1
        %s210 = scalar_lea.sflag [#allocation4], %s209
        %s211 = sand.u32 %s50, 1
        %s212 = smul.addr %s211, 8
        %s213 = scalar_lea.vmem [#allocation3], %s212
        %p214 = pneg %p63
        %p215 = pneg %p60
        %s216 = sand.u32 %s80, 1
        %s217 = scalar_lea.sflag [#allocation6], %s216
        %s218 = sand.u32 %s80, 1
        %s219 = smul.addr %s218, 2
        %s220 = scalar_lea.vmem [#allocation5], %s219
        %p221 = pneg %p93
        %p222 = pneg %p90
        %p223 = pneg %p121
        %p224 = pneg %p118
        %p225 = scmp.lt.s32.totalorder %s24, 1
        %s226 = scalar_select %p225, %s24, 1
        %p227 = scmp.lt.s32.totalorder %s25, 0
        %s228 = scalar_select %p227, %s25, 0
        %s229 = sadd.s32 %s228, %s226
        %s230 = scalar_lea.vmem %s2, %s229
        %s231 = sadd.s32 %s25, %s26
        %s232 = smul.u32 2, %s231
        %s233 = sadd.s32 %s25, %s26
        %s234 = smul.u32 2, %s233
        %p235 = scmp.lt.s32.totalorder %s24, 1
        %s236 = scalar_select %p235, %s24, 1
        %p237 = scmp.lt.s32.totalorder %s25, 0
        %s238 = scalar_select %p237, %s25, 0
        %s239 = sadd.s32 %s238, %s236
        %s240 = scalar_lea.vmem %s2, %s239
        %p241 = scmp.eq.s32.totalorder %s26, 0
        // Predicated region
        $region37: #{tpu_custom_call.1} parent=27 // pred_check
          %p242 = pneg %p241
        $region38: #{tpu_custom_call.1} parent=27 // pred_check_branch
          %244 = sbr.rel (%p242) target = $region40
        $region39: #{tpu_custom_call.1} parent=27 // pred_region
          %v245 = vlaneseq
          %vm246 = vcmp.ge.s32.totalorder %v245, 0
          %vm247 = vcmp.lt.s32.totalorder %v245, 256
          %vm248 = vmand %vm246, %vm247
          %249 = vst.msk [vmem:[#allocation2] sm:$0x3] %vm248, 0.0
        $region40: #{tpu_custom_call.1} parent=27 // pred_fallthru
          _
        %v250 = vld [vmem:[%s195] sm:$0xff]
        %v251 = vld [vmem:[%s204] sm:$0x3]
        %v252 = vlaneseq
        %v253 = vshrl.u32 %v252, 7
        %v254 = vlaneseq
        %v255 = vshrl.u32 %v254, 7
        %v256 = vsub.s32 0, %v255
        %v257 = vrot.slane %v251, %v256
        %v258 = vlaneseq
        %v259 = vshrl.u32 %v258, 7
        %v260 = vsub.s32 1, %v259
        %v261 = vrot.slane %v251, %v260
        %vm262 = vcmp.eq.s32.totalorder %v253, %v257
        %vm263 = vcmp.eq.s32.totalorder %v253, %v261
        %v265 = vcombine.high %v250, %v250
        %v267 = vsel %vm262, %v250, 0.0
        %v268 = vsel %vm263, %v265, 0.0
        %vm269 = vcmask 1043456
        %v270 = vsel %vm269, %v267, 0.0
        %v271 = vrot.slane %v270, 4
        %v272 = vadd.f32 %v270, %v271
        %v273 = vrot.slane %v272, 2
        %v274 = vadd.f32 %v272, %v273
        %v275 = vrot.slane %v274, 1
        %v276 = vadd.f32 %v274, %v275
        %v277 = vsel %vm269, %v268, 0.0
        %v278 = vrot.slane %v277, 4
        %v279 = vadd.f32 %v277, %v278
        %v280 = vrot.slane %v279, 2
        %v281 = vadd.f32 %v279, %v280
        %v282 = vrot.slane %v281, 1
        %v283 = vadd.f32 %v281, %v282
        %v284 = vsel %vm269, %v250, -inf
        %v285 = vrot.slane %v284, 4
        %v286 = vmax.f32 %v284, %v285
        %v287 = vrot.slane %v286, 2
        %v288 = vmax.f32 %v286, %v287
        %v289 = vrot.slane %v288, 1
        %v290 = vmax.f32 %v288, %v289
        %v291 = vsel %vm269, %v265, -inf
        %v292 = vrot.slane %v291, 4
        %v293 = vmax.f32 %v291, %v292
        %v294 = vrot.slane %v293, 2
        %v295 = vmax.f32 %v293, %v294
        %v296 = vrot.slane %v295, 1
        %v297 = vmax.f32 %v295, %v296
        %v300 = vcombine.low %v290, %v297
        %v302 = vsub.f32 %v250, %v300
        %v303 = vmul.f32 %v302, 1.442695
        %v304 = vpow.pop %v303
        %v306 = vcombine.high %v304, %v304
        %v308 = vsel %vm269, %v304, 0.0
        %v309 = vrot.slane %v308, 4
        %v310 = vadd.f32 %v308, %v309
        %v311 = vrot.slane %v310, 2
        %v312 = vadd.f32 %v310, %v311
        %v313 = vrot.slane %v312, 1
        %v314 = vadd.f32 %v312, %v313
        %v315 = vsel %vm269, %v306, 0.0
        %v316 = vrot.slane %v315, 4
        %v317 = vadd.f32 %v315, %v316
        %v318 = vrot.slane %v317, 2
        %v319 = vadd.f32 %v317, %v318
        %v320 = vrot.slane %v319, 1
        %v321 = vadd.f32 %v319, %v320
        %v322 = vlog2.pop %v314
        %v323 = vmul.f32 %v322, 0.6931472
        %v324 = vlog2.pop %v321
        %v325 = vmul.f32 %v324, 0.6931472
        %v326 = vadd.f32 %v290, %v323
        %v327 = vadd.f32 %v297, %v325
        %v328 = vsub.f32 %v326, %v276
        %v329 = vsub.f32 %v327, %v283
        %v330 = vld [vmem:[#allocation2] sm:$0x3]
        %v333 = vcombine.low %v328, %v329
        %v335 = vunpack.c.l.s4 1966171168
        %v336 = vunpack.c.0.s8 %v335
        %v337 = vlaneseq
        %v338 = vshrl.u32 %v337, 7
        %v339 = vsub.s32 %v336, %v338
        %v340 = vrot.slane %v333, %v339
        %v342 = vunpack.c.l.s4 1966171168
        %v343 = vunpack.c.0.s8 %v342
        %v344 = vlaneseq
        %v345 = vshrl.u32 %v344, 7
        %v346 = vsub.s32 %v343, %v345
        %v347 = vrot.slane %v340, %v346
        %v349 = vadd.f32 %v330, %v347
        %v350 = vlaneseq
        %vm351 = vcmp.ge.s32.totalorder %v350, 0
        %vm352 = vcmp.lt.s32.totalorder %v350, 256
        %vm353 = vmand %vm351, %vm352
        %354 = vst.msk [vmem:[#allocation2] sm:$0x3] %vm353, %v349
        // Predicated region
        $region41: #{tpu_custom_call.1} parent=27 // pred_check
          %p355 = pneg %p241
        $region42: #{tpu_custom_call.1} parent=27 // pred_check_branch
          %357 = sbr.rel (%p355) target = $region44
        $region43: #{tpu_custom_call.1} parent=27 // pred_region
          %v358 = vld [vmem:[#allocation2] sm:$0x3]
          %v360 = vlaneseq
          %v361 = vshrl.u32 %v360, 7
          %v362 = vsub.s32 0, %v361
          %v363 = vrot.slane %v358, %v362
          %v364 = vlaneseq
          %v365 = vshrl.u32 %v364, 7
          %v366 = vsub.s32 1, %v365
          %v367 = vrot.slane %v358, %v366
          %vm370 = vcmask 1040384
          %v371 = vsel %vm370, %v363, 0.0
          %v372 = vsel %vm370, %v367, 0.0
          %v373 = vadd.f32 %v371, %v372
          %374 = vadd.xlane.f32.xlu0 %v373
          %v375 = vpop.xlane.xlu0 %374
          %vm376 = vcmask 0
          %377 = vst.msk [vmem:[%s240] sm:$0x1] %vm376, %v375
        $region44: #{tpu_custom_call.1} parent=27 // pred_fallthru
          _
        %p378 = scmp.lt.s32.totalorder %s24, 1
        %s379 = scalar_select %p378, %s24, 1
        %p380 = scmp.lt.s32.totalorder %s25, 0
        %s381 = scalar_select %p380, %s25, 0
        %s382 = sadd.s32 %s381, %s379
        %s383 = scalar_lea.vmem %s2, %s382
        // Predicated region
        $region45: #{tpu_custom_call.1} parent=27 // pred_check
          %p384 = pneg %p118
        $region46: #{tpu_custom_call.1} parent=27 // pred_check_branch
          %386 = sbr.rel (%p384) target = $region48
        $region47: #{tpu_custom_call.1} parent=27 // pred_region
          _
        $region48: #{tpu_custom_call.1} parent=27 // pred_fallthru
          _
      $region28: #{tpu_custom_call.1} parent=5 // pred_fallthru
        _
      %p387 = scmp.le.s32.totalorder 2, %s14
      // Predicated region
      $region49: #{tpu_custom_call.1} parent=5 // pred_check
        %p388 = pneg %p387
      $region50: #{tpu_custom_call.1} parent=5 // pred_check_branch
        %390 = sbr.rel (%p388) target = $region52
      $region51: #{tpu_custom_call.1} parent=5 // pred_region
        %s391 = ssub.s32 %s14, 2
        // Predicated region
        $region53: #{tpu_custom_call.1} parent=51 // pred_check
          %p392 = pneg %p124
        $region54: #{tpu_custom_call.1} parent=51 // pred_check_branch
          %394 = sbr.rel (%p392) target = $region56
        $region55: #{tpu_custom_call.1} parent=51 // pred_region
          %p395 = scmp.lt.s32.totalorder %s27, 1
          %s396 = scalar_select %p395, %s27, 1
          %p397 = scmp.lt.s32.totalorder %s28, 0
          %s398 = scalar_select %p397, %s28, 0
          %s399 = sadd.s32 %s398, %s396
          %s400 = scalar_lea.vmem %s2, %s399
        $region56: #{tpu_custom_call.1} parent=51 // pred_fallthru
          _
      $region52: #{tpu_custom_call.1} parent=5 // pred_fallthru
        _
    $region6: #{tpu_custom_call.1} parent=1 // loop_footer
      %s18 = sadd.s32 1, %s14
    $region7: #{tpu_custom_call.1} parent=1 // loop_footer_branch
      %13 = sbr.rel target = $region3
    $region8: #{tpu_custom_call.1} parent=1 // loop_exit
      _
    %401 = vsyncpa [#allocation4], 1
    %s402 = scalar_lea.sflag [#allocation4], 1
    %403 = vsyncpa %s402, 1
    %404 = vsyncpa [#allocation6], 1
    %s405 = scalar_lea.sflag [#allocation6], 1
    %406 = vsyncpa %s405, 1

</llo_original>
